<compile_context>
chip_gen: v5e
topology: v5e:2x2
jax: 0.10.0
libtpu: 0.0.40
codegen_flags: <defaults>
</compile_context>

<pallas_src>
import functools

import jax
import jax.numpy as jnp
from jax.experimental import pallas as pl
from jax.experimental.pallas import tpu as pltpu

_SQRT_2_OVER_PI = 0.7978845608028654


def _gelu_tanh(x):
    # TODO(synk): PyTorch nn.GELU() default is the exact erf form; we use the
    # standard tanh approximation (max abs err ~3e-4) because it lowers to the
    # EUP (tanh) path, and we use it consistently in kernel + reference.
    return 0.5 * x * (1.0 + jnp.tanh(_SQRT_2_OVER_PI * (x + 0.044715 * x * x * x)))


def mlp_kernel(x_ref, w1_ref, b1_ref, w2_ref, b2_ref, o_ref):
    # x: (M, C)  w1: (C, H)  b1: (1, H)  w2: (H, C)  b2: (1, C)
    x = x_ref[...]
    # MXU matmul, f32 accumulation; bias add + GELU stay in f32 on VPU/EUP.
    h = jnp.dot(x, w1_ref[...], preferred_element_type=jnp.float32) + b1_ref[...]
    h = _gelu_tanh(h)
    y = (
        jnp.dot(h.astype(w2_ref.dtype), w2_ref[...],
                preferred_element_type=jnp.float32)
        + b2_ref[...]
    )
    o_ref[...] = y.astype(o_ref.dtype)


def _mlp_small(x2, w1, b1, w2, b2, out_dtype):
    """Whole problem VMEM-resident, no grid, no pipeline bookkeeping."""
    M, C = x2.shape
    vmem = pl.BlockSpec(memory_space=pltpu.MemorySpace.VMEM)
    return pl.pallas_call(
        mlp_kernel,
        out_shape=jax.ShapeDtypeStruct((M, C), out_dtype),
        in_specs=[vmem, vmem, vmem, vmem, vmem],
        out_specs=vmem,
    )(x2, w1, b1, w2, b2)


def _mlp_tiled(x2, w1, b1, w2, b2, out_dtype, tile_m):
    """M-tiled path: x/out streamed per tile, weights pinned in VMEM."""
    M, C = x2.shape
    H = w1.shape[-1]
    assert M % tile_m == 0  # wrapper pads
    grid = (M // tile_m,)
    return pl.pallas_call(
        mlp_kernel,
        out_shape=jax.ShapeDtypeStruct((M, C), out_dtype),
        grid=grid,
        in_specs=[
            pl.BlockSpec((tile_m, C), lambda i: (i, 0)),  # activations (streamed)
            pl.BlockSpec((C, H), lambda i: (0, 0)),       # W1^T (VMEM-resident)
            pl.BlockSpec((1, H), lambda i: (0, 0)),       # b1
            pl.BlockSpec((H, C), lambda i: (0, 0)),       # W2^T
            pl.BlockSpec((1, C), lambda i: (0, 0)),       # b2
        ],
        out_specs=pl.BlockSpec((tile_m, C), lambda i: (i, 0)),
        compiler_params=pltpu.CompilerParams(
            # Parallel M axis -> megacore sharding across v7x's 2 TensorCores
            # (no-op on single-TC v5e/v6e).
            dimension_semantics=("parallel",),
        ),
    )(x2, w1, b1, w2, b2)


def mlp_pallas(x, w1_t, b1, w2_t, b2, *, tile_m=512, compute_dtype=None):
    """Applies the MLP to the last dimension of x (any leading batch dims).

    compute_dtype: optionally cast x / W1 / W2 to bf16 for the MXU on
    v6e/v7x; accumulation, biases and GELU remain f32, output keeps x.dtype.
    """
    orig_shape = x.shape
    C = orig_shape[-1]
    H = w1_t.shape[-1]
    assert w1_t.shape == (C, H)
    assert w2_t.shape == (H, C)
    out_dtype = x.dtype

    # Flatten all leading dims into one row axis: amortizes the fixed
    # pallas_call + MXU issue/drain latency across every token in the batch.
    x2 = x.reshape(-1, C)
    M = x2.shape[0]

    if compute_dtype is not None:
        x2 = x2.astype(compute_dtype)
        w1 = w1_t.astype(compute_dtype)
        w2 = w2_t.astype(compute_dtype)
    else:
        w1, w2 = w1_t, w2_t
    b1f = b1.astype(jnp.float32)
    b2f = b2.astype(jnp.float32)

    if M <= tile_m:
        out = _mlp_small(x2, w1, b1f, w2, b2f, out_dtype)
    else:
        # Pad M to a multiple of tile_m so the (8, 128)-style BlockSpec
        # divisibility constraint on the tiled row axis is always satisfied.
        m_pad = pl.cdiv(M, tile_m) * tile_m
        if m_pad != M:
            x2 = jnp.pad(x2, ((0, m_pad - M), (0, 0)))
        out = _mlp_tiled(x2, w1, b1f, w2, b2f, out_dtype, tile_m)
        if m_pad != M:
            out = out[:M]

    return out.reshape(orig_shape)


def mlp_ref(x, w1_t, b1, w2_t, b2):
    """Pure-JAX reference mirroring the PyTorch forward (tanh GELU)."""
    h = x @ w1_t + b1[0]
    h = _gelu_tanh(h)
    return h @ w2_t + b2[0]


if __name__ == "__main__":
    # Shapes consistent with the module: tokens (B, N, num_channels),
    # MLP(num_channels=32, hidden_size=128).
    B, N, num_channels, hidden_size = 2, 8, 32, 128

    key = jax.random.PRNGKey(0)
    kx, kw1, kb1, kw2, kb2, kx2 = jax.random.split(key, 6)

    x = jax.random.normal(kx, (B, N, num_channels), dtype=jnp.float32)

    # nn.Linear weights are (out, in); we keep them pre-transposed to (in, out).
    w1_t = jax.random.normal(kw1, (num_channels, hidden_size), jnp.float32) * 0.05
    b1 = jax.random.normal(kb1, (1, hidden_size), jnp.float32) * 0.05
    w2_t = jax.random.normal(kw2, (hidden_size, num_channels), jnp.float32) * 0.05
    b2 = jax.random.normal(kb2, (1, num_channels), jnp.float32) * 0.05

    # --- Small-M path (gridless, everything VMEM-resident) ------------------
    out = mlp_pallas(x, w1_t, b1, w2_t, b2)
    out = jax.block_until_ready(out)
    ref = mlp_ref(x, w1_t, b1, w2_t, b2)
    assert out.shape == (B, N, num_channels)
    assert jnp.allclose(out, ref, atol=1e-5, rtol=1e-5), "small-path mismatch"

    # --- Tiled large-M path (exercises grid + resident weights) -------------
    B_big, N_big = 16, 130  # M = 2080: not a multiple of tile_m -> pad path too
    x_big = jax.random.normal(kx2, (B_big, N_big, num_channels), jnp.float32)
    out_big = mlp_pallas(x_big, w1_t, b1, w2_t, b2, tile_m=512)
    out_big = jax.block_until_ready(out_big)
    ref_big = mlp_ref(x_big, w1_t, b1, w2_t, b2)
    assert out_big.shape == (B_big, N_big, num_channels)
    assert jnp.allclose(out_big, ref_big, atol=1e-5, rtol=1e-5), "tiled mismatch"

    # --- bf16 MXU-operand path (v6e/v7x recommendation), f32 accumulation ---
    out_bf16 = mlp_pallas(x_big, w1_t, b1, w2_t, b2, tile_m=512,
                          compute_dtype=jnp.bfloat16)
    out_bf16 = jax.block_until_ready(out_bf16)
    assert out_bf16.dtype == jnp.float32
    assert jnp.allclose(out_bf16, ref_big, atol=2e-2, rtol=2e-2), "bf16 mismatch"

    print("KERNEL_OK")
</pallas_src>

<mosaic_0001>
module attributes {stable_mosaic.version = 11 : i64} {
  func.func @mlp_kernel(%arg0: memref<16x32xf32, #tpu.memory_space<vmem>>, %arg1: memref<32x128xf32, #tpu.memory_space<vmem>>, %arg2: memref<1x128xf32, #tpu.memory_space<vmem>>, %arg3: memref<128x32xf32, #tpu.memory_space<vmem>>, %arg4: memref<1x32xf32, #tpu.memory_space<vmem>>, %arg5: memref<16x32xf32, #tpu.memory_space<vmem>>) attributes {dimension_semantics = [], scalar_prefetch = 0 : i64, scratch_operands = 0 : i64, tpu.core_type = #tpu.core_type<tc>} {
    %c0 = arith.constant 0 : index
    %c0_0 = arith.constant 0 : index
    %0 = vector.load %arg0[%c0, %c0_0] : memref<16x32xf32, #tpu.memory_space<vmem>>, vector<16x32xf32>
    %c0_1 = arith.constant 0 : index
    %c0_2 = arith.constant 0 : index
    %1 = vector.load %arg1[%c0_1, %c0_2] : memref<32x128xf32, #tpu.memory_space<vmem>>, vector<32x128xf32>
    %cst = arith.constant dense<0.000000e+00> : vector<16x128xf32>
    %2 = tpu.matmul %0, %1, %cst {dimension_numbers = #tpu.dot_dimension_numbers<[1], [0], [0], [1], [0, 0, 1, 1], [], []>} : vector<16x32xf32>, vector<32x128xf32>, vector<16x128xf32> -> vector<16x128xf32>
    %c0_3 = arith.constant 0 : index
    %c0_4 = arith.constant 0 : index
    %3 = vector.load %arg2[%c0_3, %c0_4] : memref<1x128xf32, #tpu.memory_space<vmem>>, vector<1x128xf32>
    %4 = vector.broadcast %3 : vector<1x128xf32> to vector<16x128xf32>
    %5 = arith.addf %2, %4 : vector<16x128xf32>
    %cst_5 = arith.constant 5.000000e-01 : f32
    %6 = vector.broadcast %cst_5 : f32 to vector<16x128xf32>
    %7 = arith.mulf %6, %5 : vector<16x128xf32>
    %cst_6 = arith.constant 4.471500e-02 : f32
    %8 = vector.broadcast %cst_6 : f32 to vector<16x128xf32>
    %9 = arith.mulf %8, %5 : vector<16x128xf32>
    %10 = arith.mulf %9, %5 : vector<16x128xf32>
    %11 = arith.mulf %10, %5 : vector<16x128xf32>
    %12 = arith.addf %5, %11 : vector<16x128xf32>
    %cst_7 = arith.constant 0.797884583 : f32
    %13 = vector.broadcast %cst_7 : f32 to vector<16x128xf32>
    %14 = arith.mulf %13, %12 : vector<16x128xf32>
    %15 = math.tanh %14 : vector<16x128xf32>
    %cst_8 = arith.constant 1.000000e+00 : f32
    %16 = vector.broadcast %cst_8 : f32 to vector<16x128xf32>
    %17 = arith.addf %16, %15 : vector<16x128xf32>
    %18 = arith.mulf %7, %17 : vector<16x128xf32>
    %c0_9 = arith.constant 0 : index
    %c0_10 = arith.constant 0 : index
    %19 = vector.load %arg3[%c0_9, %c0_10] : memref<128x32xf32, #tpu.memory_space<vmem>>, vector<128x32xf32>
    %cst_11 = arith.constant dense<0.000000e+00> : vector<16x32xf32>
    %20 = tpu.matmul %18, %19, %cst_11 {dimension_numbers = #tpu.dot_dimension_numbers<[1], [0], [0], [1], [0, 0, 1, 1], [], []>} : vector<16x128xf32>, vector<128x32xf32>, vector<16x32xf32> -> vector<16x32xf32>
    %c0_12 = arith.constant 0 : index
    %c0_13 = arith.constant 0 : index
    %21 = vector.load %arg4[%c0_12, %c0_13] : memref<1x32xf32, #tpu.memory_space<vmem>>, vector<1x32xf32>
    %22 = vector.broadcast %21 : vector<1x32xf32> to vector<16x32xf32>
    %23 = arith.addf %20, %22 : vector<16x32xf32>
    %c0_14 = arith.constant 0 : index
    %c0_15 = arith.constant 0 : index
    %24 = vector.load %arg5[%c0_14, %c0_15] : memref<16x32xf32, #tpu.memory_space<vmem>>, vector<16x32xf32>
    tpu.vector_store %arg5[%c0_14, %c0_15], %23 {strides = array<i32>} : memref<16x32xf32, #tpu.memory_space<vmem>>, vector<16x32xf32>,
    return
  }
}

</mosaic_0001>

<llo_original>
// kernel: tpu_custom_call.1
$region0: #{tpu_custom_call.1}
  #allocation0 [shape = 'u32[]', space=smem, size = 0x4, offset = 0x4, fixed_abs, tag = 'smem constant byte address 0x4 - core index']
  #allocation1 [shape = 'u32[72,128]{1,0:T(1,128)}', space=vmem, size = 0x9000, scoped, tag = 'internal scratch']
  %s0 = inlined_call_operand.vmem [shape: f32[16,32], index: 0, kind: input, shape index: {}]
  %s1 = inlined_call_operand.vmem [shape: f32[32,128], index: 1, kind: input, shape index: {}]
  %s2 = inlined_call_operand.vmem [shape: f32[1,128], index: 2, kind: input, shape index: {}]
  %s3 = inlined_call_operand.vmem [shape: f32[128,32], index: 3, kind: input, shape index: {}]
  %s4 = inlined_call_operand.vmem [shape: f32[1,32], index: 4, kind: input, shape index: {}]
  %s5 = inlined_call_operand.hbm [shape: f32[16,32], index: 5, kind: output, shape index: {}]
  %s6 = sld [smem:[#allocation0]]
  $region30: #{tpu_custom_call.1} parent=0
    _
  %s8 = ssub.s32 1, %s6
  %s9 = scalar_select 0, %s8, %s6
  $region1: #{tpu_custom_call.1} parent=0
    #allocation2 [shape = 'u8[8192]{0}', space=vmem, size = 0x2000, scoped, tag = 'output window, operand 0, single buffered']
    #allocation3 [shape = 's32[1]{0}', space=sflag, size = 0x4, scoped, tag = 'scoped memory for tpu_custom_call.1']
    %10 = vsyncpa [#allocation3], 0
    // Predicated region
    $region2: #{tpu_custom_call.1} parent=1 // pred_check
      _
    $region3: #{tpu_custom_call.1} parent=1 // pred_check_branch
      %12 = sbr.rel (0) target = $region5
    $region4: #{tpu_custom_call.1} parent=1 // pred_region
      _
    $region5: #{tpu_custom_call.1} parent=1 // pred_fallthru
      _
    // Predicated region
    $region6: #{tpu_custom_call.1} parent=1 // pred_check
      _
    $region7: #{tpu_custom_call.1} parent=1 // pred_check_branch
      %14 = sbr.rel (0) target = $region9
    $region8: #{tpu_custom_call.1} parent=1 // pred_region
      _
    $region9: #{tpu_custom_call.1} parent=1 // pred_fallthru
      _
    // Predicated region
    $region10: #{tpu_custom_call.1} parent=1 // pred_check
      _
    $region11: #{tpu_custom_call.1} parent=1 // pred_check_branch
      %16 = sbr.rel (0) target = $region13
    $region12: #{tpu_custom_call.1} parent=1 // pred_region
      _
    $region13: #{tpu_custom_call.1} parent=1 // pred_fallthru
      _
    // Predicated region
    $region14: #{tpu_custom_call.1} parent=1 // pred_check
      _
    $region15: #{tpu_custom_call.1} parent=1 // pred_check_branch
      %18 = sbr.rel (0) target = $region17
    $region16: #{tpu_custom_call.1} parent=1 // pred_region
      _
    $region17: #{tpu_custom_call.1} parent=1 // pred_fallthru
      _
    // Predicated region
    $region18: #{tpu_custom_call.1} parent=1 // pred_check
      _
    $region19: #{tpu_custom_call.1} parent=1 // pred_check_branch
      %20 = sbr.rel (0) target = $region21
    $region20: #{tpu_custom_call.1} parent=1 // pred_region
      _
    $region21: #{tpu_custom_call.1} parent=1 // pred_fallthru
      _
    %v21 = vld [vmem:[%s0] sm:$0xff]
    %v22 = vld [vmem:[%s0 + $0x8] sm:$0xff]
    %v23 = vld [vmem:[%s1] sm:$0xff]
    %v24 = vld [vmem:[%s1 + $0x8] sm:$0xff]
    %v25 = vld [vmem:[%s1 + $0x10] sm:$0xff]
    %v26 = vld [vmem:[%s1 + $0x18] sm:$0xff]
    %v27 = vld [vmem:[%s2] sm:$0x1]
    %v29 = vperm.slane %v27, 0
    %vm31 = vcmask 261120
    %v33 = vsel %vm31, %v21, 0
    %v36 = vsel %vm31, %v22, 0
    %38 = vmatpush.msra.mxu0 0.0
    %39 = vmatpush.msra.mxu0 0.0
    %40 = vmatpush.msra.mxu0 0.0
    %41 = vmatpush.msra.mxu0 0.0
    %42 = vmatpush.msra.mxu0 0.0
    %43 = vmatpush.msra.mxu0 0.0
    %44 = vmatpush.msra.mxu0 0.0
    %45 = vmatpush.msra.mxu0 0.0
    %46 = vmatpush.msra.mxu0 0.0
    %47 = vmatpush.msra.mxu0 0.0
    %48 = vmatpush.msra.mxu0 0.0
    %49 = vmatpush.msra.mxu0 0.0
    %50 = vmatpush.msra.mxu0 %v26
    %51 = vmatpush.msra.mxu0 %v25
    %52 = vmatpush.msra.mxu0 %v24
    %53 = vmatpush.msra.mxu0 %v23
    %54 = vmatmul.f32.gmra.mxu0 %v33
    %v55 = vpop.f32.mrf.mxu0
    %v56 = vadd.f32 %v29, %v55
    %57 = vmatmul.f32.gmra.mxu0 %v36
    %v58 = vpop.f32.mrf.mxu0
    %v59 = vadd.f32 %v29, %v58
    %60 = vdwg.mxu0
    %v61 = vmul.f32 %v56, 0.5
    %v62 = vmul.f32 %v59, 0.5
    %v63 = vmul.f32 %v56, 0.044715
    %v64 = vmul.f32 %v59, 0.044715
    %v65 = vmul.f32 %v63, %v56
    %v66 = vmul.f32 %v64, %v59
    %v67 = vmul.f32 %v65, %v56
    %v68 = vmul.f32 %v66, %v59
    %v69 = vadd.f32 %v56, %v67
    %v70 = vadd.f32 %v59, %v68
    %v71 = vmul.f32 %v69, 0.7978846
    %v72 = vmul.f32 %v70, 0.7978846
    %v73 = vtanh.pop %v71
    %v74 = vtanh.pop %v72
    %v75 = vadd.f32 %v73, 1.0
    %v76 = vadd.f32 %v74, 1.0
    %v77 = vmul.f32 %v61, %v75
    %v78 = vmul.f32 %v62, %v76
    %v79 = vld [vmem:[%s3] sm:$0xff]
    %v80 = vld [vmem:[%s3 + $0x8] sm:$0xff]
    %v81 = vld [vmem:[%s3 + $0x10] sm:$0xff]
    %v82 = vld [vmem:[%s3 + $0x18] sm:$0xff]
    %v83 = vld [vmem:[%s3 + $0x20] sm:$0xff]
    %v84 = vld [vmem:[%s3 + $0x28] sm:$0xff]
    %v85 = vld [vmem:[%s3 + $0x30] sm:$0xff]
    %v86 = vld [vmem:[%s3 + $0x38] sm:$0xff]
    %v87 = vld [vmem:[%s3 + $0x40] sm:$0xff]
    %v88 = vld [vmem:[%s3 + $0x48] sm:$0xff]
    %v89 = vld [vmem:[%s3 + $0x50] sm:$0xff]
    %v90 = vld [vmem:[%s3 + $0x58] sm:$0xff]
    %v91 = vld [vmem:[%s3 + $0x60] sm:$0xff]
    %v92 = vld [vmem:[%s3 + $0x68] sm:$0xff]
    %v93 = vld [vmem:[%s3 + $0x70] sm:$0xff]
    %v94 = vld [vmem:[%s3 + $0x78] sm:$0xff]
    %v95 = vld [vmem:[%s4] sm:$0x1]
    %v97 = vperm.slane %v95, 0
    %99 = vmatpush.msra.mxu0 %v94
    %100 = vmatpush.msra.mxu0 %v93
    %101 = vmatpush.msra.mxu0 %v92
    %102 = vmatpush.msra.mxu0 %v91
    %103 = vmatpush.msra.mxu0 %v90
    %104 = vmatpush.msra.mxu0 %v89
    %105 = vmatpush.msra.mxu0 %v88
    %106 = vmatpush.msra.mxu0 %v87
    %107 = vmatpush.msra.mxu0 %v86
    %108 = vmatpush.msra.mxu0 %v85
    %109 = vmatpush.msra.mxu0 %v84
    %110 = vmatpush.msra.mxu0 %v83
    %111 = vmatpush.msra.mxu0 %v82
    %112 = vmatpush.msra.mxu0 %v81
    %113 = vmatpush.msra.mxu0 %v80
    %114 = vmatpush.msra.mxu0 %v79
    %115 = vmatmul.f32.gmra.mxu0 %v77
    %v116 = vpop.f32.mrf.mxu0
    %v117 = vadd.f32 %v97, %v116
    %118 = vmatmul.f32.gmra.mxu0 %v78
    %v119 = vpop.f32.mrf.mxu0
    %v120 = vadd.f32 %v97, %v119
    %121 = vdwg.mxu0
    %122 = vst.msk [vmem:[#allocation2] sm:$0xff] %vm31, %v117
    %123 = vst.msk [vmem:[#allocation2 + $0x8] sm:$0xff] %vm31, %v120
    // Predicated region
    $region22: #{tpu_custom_call.1} parent=1 // pred_check
      _
    $region23: #{tpu_custom_call.1} parent=1 // pred_check_branch
      %125 = sbr.rel (0) target = $region25
    $region24: #{tpu_custom_call.1} parent=1 // pred_region
      %127 = vsyncadd [#allocation3], 0
      %s128 = sshll.u32 [#allocation2], 4
      %s129 = int_to_ptr.vmem [resolvable:$true] %s128
      %s130 = sshll.u32 %s5, 4
      %s131 = int_to_ptr.hbm [resolvable:$true] %s130
      %136 = dma.vmem_to_hbm [thread:$0]  %s129, 256, %s131, [#allocation3], 128, 128, 8
    $region25: #{tpu_custom_call.1} parent=1 // pred_fallthru
      _
    // Predicated region
    $region26: #{tpu_custom_call.1} parent=1 // pred_check
      _
    $region27: #{tpu_custom_call.1} parent=1 // pred_check_branch
      %138 = sbr.rel (0) target = $region29
    $region28: #{tpu_custom_call.1} parent=1 // pred_region
      %140 = dma.done [#allocation3], 256
    $region29: #{tpu_custom_call.1} parent=1 // pred_fallthru
      _
    %141 = vsyncpa [#allocation3], 1

</llo_original>
